<compile_context>
chip_gen: v7x
topology: tpu7x:2x2x1
jax: 0.10.0
libtpu: 0.0.40
codegen_flags: <defaults>
</compile_context>

<pallas_src>
import jax
import jax.numpy as jnp
import numpy as np
from jax.experimental import pallas as pl
from jax.experimental.pallas import tpu as pltpu

# ----- DeepLION hyper-parameters -----------------------------------------------------
AA_NUM      = 16            # sequence length (L)
FEATURE_NUM = 8             # input channels  (C)
FILTER_NUM  = [8, 8]        # conv filters per kernel size
KERNEL_SIZE = [2, 3]        # conv kernel sizes
INS_NUM     = 8             # instances (TCRs) per bag
DROP_OUT    = 0.4           # dropout prob (identity at inference)
SUM_F       = sum(FILTER_NUM)
CL          = FEATURE_NUM * AA_NUM      # 128: flattened (c*L + l) per-instance row
COLS        = SUM_F * AA_NUM            # 256: (filter, t-slot) columns, t padded to L


def _round_up(x, m):
    return (x + m - 1) // m * m


# ----- fused kernel: conv tower (Toeplitz matmul) + ReLU + max-pool + fc --------------
def _deeplion_kernel(x_ref, wt_ref, bcol_ref, wfc_ref, bfc_ref, out_ref):
    # x_ref   : (tile_n, CL)     instances, flattened (C, L) rows
    # wt_ref  : (COLS, CL)       block-Toeplitz conv weights (both kernel sizes)
    # bcol_ref: (COLS, 1)        per-column conv bias (0 on padded t-slots)
    # wfc_ref : (SUM_F, 1)       fc weight column
    # bfc_ref : (1, 1)  SMEM     fc bias scalar
    # out_ref : (1, 1, tile_n)   per-instance fc scores, lane-dense row
    # One MXU matmul covers both conv groups and every output position.
    acc = jnp.einsum('cd,nd->cn', wt_ref[...], x_ref[...],
                     preferred_element_type=jnp.float32)          # (COLS, tile_n) f32
    acc = acc + bcol_ref[...]                                     # conv bias
    acc = jnp.maximum(acc, 0.0)                                   # ReLU
    # AdaptiveMaxPool1d(1): max over the AA_NUM t-slots of each filter.  Padded
    # t-slots are exactly 0 and never win because ReLU output is >= 0.
    feat = jnp.max(acc.reshape(SUM_F, AA_NUM, -1), axis=1)        # (SUM_F, tile_n)
    # fc: Linear(SUM_F, 1) -> lane-dense score row.
    score = jnp.sum(feat * wfc_ref[...], axis=0, keepdims=True)   # (1, tile_n)
    score = score + bfc_ref[0, 0]
    out_ref[...] = score.reshape(1, 1, -1).astype(out_ref.dtype)


# ----- im2col / block-Toeplitz construction (host side, tiny) -------------------------
def _build_toeplitz(conv_w, conv_b):
    """Fold all Conv1d groups into one (COLS, CL) weight + (COLS, 1) bias.

    Column (f_off + f) * AA_NUM + t holds filter f of its group at output position t;
    positions t >= L_out(group) are zero-weight / zero-bias padding.
    """
    w_toe = np.zeros((CL, COLS), np.float32)
    b_col = np.zeros((COLS,), np.float32)
    f_off = 0
    for w, b, h in zip(conv_w, conv_b, KERNEL_SIZE):
        w_np = np.asarray(w, np.float32)          # (F, C, h)
        b_np = np.asarray(b, np.float32)          # (F,)
        f_num = w_np.shape[0]
        l_out = AA_NUM - h + 1
        for f in range(f_num):
            for t in range(l_out):
                col = (f_off + f) * AA_NUM + t
                b_col[col] = b_np[f]
                for k in range(h):
                    rows = np.arange(FEATURE_NUM) * AA_NUM + (t + k)
                    w_toe[rows, col] = w_np[f, :, k]
        f_off += f_num
    return np.ascontiguousarray(w_toe.T), b_col.reshape(COLS, 1)


# ----- parameter init (deterministic, PyTorch-shaped) ---------------------------------
def init_params(key):
    n_keys = 2 * len(KERNEL_SIZE) + 4
    keys = jax.random.split(key, n_keys)
    ki = 0
    conv_w, conv_b = [], []
    for h, f in zip(KERNEL_SIZE, FILTER_NUM):
        conv_w.append(0.1 * jax.random.normal(keys[ki], (f, FEATURE_NUM, h), jnp.float32)); ki += 1
        conv_b.append(0.1 * jax.random.normal(keys[ki], (f,), jnp.float32)); ki += 1
    w_fc  = 0.1 * jax.random.normal(keys[ki], (1, SUM_F), jnp.float32); ki += 1
    b_fc  = 0.1 * jax.random.normal(keys[ki], (1,), jnp.float32); ki += 1
    w_fc1 = 0.1 * jax.random.normal(keys[ki], (2, INS_NUM), jnp.float32); ki += 1
    b_fc1 = 0.1 * jax.random.normal(keys[ki], (2,), jnp.float32); ki += 1
    return conv_w, conv_b, w_fc, b_fc, w_fc1, b_fc1


# ----- forward wrapper -----------------------------------------------------------------
def deeplion_forward(x, params, *, tile_n=1024, compute_dtype=jnp.float32):
    conv_w, conv_b, w_fc, b_fc, w_fc1, b_fc1 = params

    # PyTorch: x.reshape(-1, feature_num, aa_num) -> (N, C, L).  We flatten straight to
    # (N, C*L) in native layout: no transpose, no extra HBM rewrite.
    x2d = jnp.asarray(x, jnp.float32).reshape(-1, CL).astype(compute_dtype)
    n = x2d.shape[0]
    assert n % INS_NUM == 0, "instance count must be a multiple of ins_num"

    # Instances per grid step: as large as practical (>= 128 keeps the output row
    # lane-dense).  On v7x pick tile_n so the grid length stays >= 2 (two TensorCores).
    tile = _round_up(min(tile_n, n), 8)
    n_pad = _round_up(n, tile)
    if n_pad != n:
        x2d = jnp.concatenate([x2d, jnp.zeros((n_pad - n, CL), x2d.dtype)], axis=0)
    grid = n_pad // tile

    w_toe, b_col = _build_toeplitz(conv_w, conv_b)
    w_toe   = jnp.asarray(w_toe, compute_dtype)                    # (COLS, CL)
    b_col   = jnp.asarray(b_col, jnp.float32)                      # (COLS, 1)
    wfc_col = jnp.asarray(w_fc, jnp.float32).reshape(SUM_F, 1)     # (SUM_F, 1)
    bfc     = jnp.asarray(b_fc, jnp.float32).reshape(1, 1)         # (1, 1) -> SMEM

    scores = pl.pallas_call(
        _deeplion_kernel,
        out_shape=jax.ShapeDtypeStruct((grid, 1, tile), jnp.float32),
        grid=(grid,),
        in_specs=[
            pl.BlockSpec((tile, CL), lambda i: (i, 0)),
            pl.BlockSpec((COLS, CL), lambda i: (0, 0)),   # constant index map: DMA once
            pl.BlockSpec((COLS, 1), lambda i: (0, 0)),
            pl.BlockSpec((SUM_F, 1), lambda i: (0, 0)),
            pl.BlockSpec(memory_space=pltpu.MemorySpace.SMEM),
        ],
        out_specs=pl.BlockSpec((1, 1, tile), lambda i: (i, 0, 0)),
        compiler_params=pltpu.CompilerParams(dimension_semantics=("parallel",)),
    )(x2d, w_toe, b_col, wfc_col, bfc)

    # nn.Dropout(p) is identity at inference.
    scores = scores.reshape(n_pad)[:n].reshape(-1, INS_NUM)        # (B, ins_num)
    # fc_1: Linear(ins_num, 2) is a (B,8)@(8,2) matmul -- left to XLA instead of a
    # second pallas_call launch (pure overhead at this size).
    return scores @ jnp.asarray(w_fc1, jnp.float32).T + jnp.asarray(b_fc1, jnp.float32)


# ----- plain-JAX reference (mirrors the PyTorch forward) --------------------------------
def deeplion_reference(x, params):
    conv_w, conv_b, w_fc, b_fc, w_fc1, b_fc1 = params
    x = jnp.asarray(x, jnp.float32).reshape(-1, FEATURE_NUM, AA_NUM)   # (N, C, L)
    feats = []
    for w, b, h in zip(conv_w, conv_b, KERNEL_SIZE):
        l_out = AA_NUM - h + 1
        cols = [jnp.einsum('nch,fch->nf', x[:, :, t:t + h], w) + b for t in range(l_out)]
        conv = jnp.stack(cols, axis=-1)                                # (N, F, L_out)
        feats.append(jnp.max(jnp.maximum(conv, 0.0), axis=-1))         # (N, F)
    feat = jnp.concatenate(feats, axis=1)                              # (N, SUM_F)
    score = feat @ w_fc.T + b_fc                                       # (N, 1)
    score = score.reshape(-1, INS_NUM)                                 # (B, ins_num)
    return score @ w_fc1.T + b_fc1                                     # (B, 2)


if __name__ == "__main__":
    B = 2
    key = jax.random.PRNGKey(0)
    kx, kp = jax.random.split(key)
    x = jax.random.normal(kx, (B, INS_NUM, FEATURE_NUM, AA_NUM), jnp.float32)
    params = init_params(kp)

    ref = deeplion_reference(x, params)

    # float32 path: exact-ish match against the reference.
    out = jax.block_until_ready(deeplion_forward(x, params))
    assert out.shape == (B, 2)
    np.testing.assert_allclose(np.asarray(out), np.asarray(ref), rtol=1e-4, atol=1e-4)

    # bf16 MXU path (halves x / conv-weight HBM bytes on v5e/v6e/v7x); elementwise
    # math stays f32, so it stays close to the f32 reference.
    out_bf16 = jax.block_until_ready(
        deeplion_forward(x, params, compute_dtype=jnp.bfloat16))
    np.testing.assert_allclose(np.asarray(out_bf16), np.asarray(ref), rtol=2e-2, atol=2e-2)

    print("KERNEL_OK")
</pallas_src>

<mosaic_0001>
module attributes {stable_mosaic.version = 11 : i64} {
  func.func @_deeplion_kernel(%arg0: i32, %arg1: memref<16x128xf32, #tpu.memory_space<vmem>>, %arg2: memref<256x128xf32, #tpu.memory_space<vmem>>, %arg3: memref<256x1xf32, #tpu.memory_space<vmem>>, %arg4: memref<16x1xf32, #tpu.memory_space<vmem>>, %arg5: memref<1x1xf32, #tpu.memory_space<smem>>, %arg6: memref<1x1x16xf32, #tpu.memory_space<vmem>>) attributes {dimension_semantics = [#tpu.dimension_semantics<parallel>], iteration_bounds = array<i64: 1>, scalar_prefetch = 0 : i64, scratch_operands = 0 : i64, tpu.core_type = #tpu.core_type<tc>, window_params = [{transform_indices = @transform_0, window_bounds = array<i64: 16, 128>}, {pipeline_mode = #tpu.pipeline_mode<synchronous>, transform_indices = @transform_1, window_bounds = array<i64: 256, 128>}, {pipeline_mode = #tpu.pipeline_mode<synchronous>, transform_indices = @transform_2, window_bounds = array<i64: 256, 1>}, {pipeline_mode = #tpu.pipeline_mode<synchronous>, transform_indices = @transform_3, window_bounds = array<i64: 16, 1>}, {transform_indices = @transform_4, window_bounds = array<i64: 1, 1>}, {transform_indices = @transform_5, window_bounds = array<i64: 1, 1, 16>}]} {
    %c0 = arith.constant 0 : index
    %c0_0 = arith.constant 0 : index
    %0 = vector.load %arg2[%c0, %c0_0] : memref<256x128xf32, #tpu.memory_space<vmem>>, vector<256x128xf32>
    %c0_1 = arith.constant 0 : index
    %c0_2 = arith.constant 0 : index
    %1 = vector.load %arg1[%c0_1, %c0_2] : memref<16x128xf32, #tpu.memory_space<vmem>>, vector<16x128xf32>
    "tpu.trace_start"() <{level = 10 : i32, message = "cd,nd->cn"}> : () -> ()
    %cst = arith.constant dense<0.000000e+00> : vector<256x16xf32>
    %2 = tpu.matmul %0, %1, %cst {dimension_numbers = #tpu.dot_dimension_numbers<[1], [1], [0], [0], [0, 0, 1, 0], [], []>} : vector<256x128xf32>, vector<16x128xf32>, vector<256x16xf32> -> vector<256x16xf32>
    "tpu.trace_stop"() : () -> ()
    %c0_3 = arith.constant 0 : index
    %c0_4 = arith.constant 0 : index
    %3 = vector.load %arg3[%c0_3, %c0_4] : memref<256x1xf32, #tpu.memory_space<vmem>>, vector<256x1xf32>
    %4 = vector.broadcast %3 : vector<256x1xf32> to vector<256x16xf32>
    %5 = arith.addf %2, %4 : vector<256x16xf32>
    %cst_5 = arith.constant 0.000000e+00 : f32
    %6 = vector.broadcast %cst_5 : f32 to vector<256x16xf32>
    %7 = arith.maximumf %5, %6 : vector<256x16xf32>
    %8 = vector.shape_cast %7 : vector<256x16xf32> to vector<16x16x16xf32>
    %cst_6 = arith.constant dense<0xFF800000> : vector<16x16xf32>
    %9 = vector.multi_reduction <maximumf>, %8, %cst_6 [1] : vector<16x16x16xf32> to vector<16x16xf32>
    %c0_7 = arith.constant 0 : index
    %c0_8 = arith.constant 0 : index
    %10 = vector.load %arg4[%c0_7, %c0_8] : memref<16x1xf32, #tpu.memory_space<vmem>>, vector<16x1xf32>
    %11 = vector.broadcast %10 : vector<16x1xf32> to vector<16x16xf32>
    %12 = arith.mulf %9, %11 : vector<16x16xf32>
    %cst_9 = arith.constant dense<0.000000e+00> : vector<16xf32>
    %13 = vector.multi_reduction <add>, %12, %cst_9 [0] : vector<16x16xf32> to vector<16xf32>
    %14 = vector.shape_cast %13 : vector<16xf32> to vector<1x16xf32>
    %c0_10 = arith.constant 0 : index
    %c0_11 = arith.constant 0 : index
    %15 = memref.load %arg5[%c0_10, %c0_11] : memref<1x1xf32, #tpu.memory_space<smem>>
    %16 = vector.broadcast %15 : f32 to vector<1x16xf32>
    %17 = arith.addf %14, %16 : vector<1x16xf32>
    %18 = vector.shape_cast %17 : vector<1x16xf32> to vector<1x1x16xf32>
    %c0_12 = arith.constant 0 : index
    %c0_13 = arith.constant 0 : index
    %c0_14 = arith.constant 0 : index
    %19 = vector.load %arg6[%c0_12, %c0_13, %c0_14] : memref<1x1x16xf32, #tpu.memory_space<vmem>>, vector<1x1x16xf32>
    tpu.vector_store %arg6[%c0_12, %c0_13, %c0_14], %18 {strides = array<i32>} : memref<1x1x16xf32, #tpu.memory_space<vmem>>, vector<1x1x16xf32>,
    return
  }
  func.func @transform_0(%arg0: i32) -> (i32, i32) {
    %c0_i32 = arith.constant 0 : i32
    %c0_i32_0 = arith.constant 0 : i32
    return %arg0, %c0_i32 : i32, i32
  }
  func.func @transform_1(%arg0: i32) -> (i32, i32) {
    %c0_i32 = arith.constant 0 : i32
    %c0_i32_0 = arith.constant 0 : i32
    %c0_i32_1 = arith.constant 0 : i32
    return %c0_i32, %c0_i32_0 : i32, i32
  }
  func.func @transform_2(%arg0: i32) -> (i32, i32) {
    %c0_i32 = arith.constant 0 : i32
    %c0_i32_0 = arith.constant 0 : i32
    %c0_i32_1 = arith.constant 0 : i32
    return %c0_i32, %c0_i32_0 : i32, i32
  }
  func.func @transform_3(%arg0: i32) -> (i32, i32) {
    %c0_i32 = arith.constant 0 : i32
    %c0_i32_0 = arith.constant 0 : i32
    %c0_i32_1 = arith.constant 0 : i32
    return %c0_i32, %c0_i32_0 : i32, i32
  }
  func.func @transform_4(%arg0: i32) -> (i32, i32) {
    %c0_i32 = arith.constant 0 : i32
    %c0_i32_0 = arith.constant 0 : i32
    %c0_i32_1 = arith.constant 0 : i32
    return %c0_i32, %c0_i32_0 : i32, i32
  }
  func.func @transform_5(%arg0: i32) -> (i32, i32, i32) {
    %c0_i32 = arith.constant 0 : i32
    %c0_i32_0 = arith.constant 0 : i32
    %c0_i32_1 = arith.constant 0 : i32
    return %arg0, %c0_i32, %c0_i32_0 : i32, i32, i32
  }
}

</mosaic_0001>

<llo_original>
// kernel: tpu_custom_call.1
$region0: #{tpu_custom_call.1}
  #allocation0 [shape = 'u32[]', space=smem, size = 0x4, offset = 0x4, fixed_abs, tag = 'smem constant byte address 0x4 - core index']
  #allocation1 [shape = 'u32[144,128]{1,0:T(1,128)}', space=vmem, size = 0x12000, scoped, tag = 'internal scratch']
  #allocation2 [shape = 'f32[1,1]{1,0:T(1,128)S(6)}', space=smem, size = 0x200, scoped, tag = 'scoped memory for tpu_custom_call.1']
  %s0 = inlined_call_operand.vmem [shape: f32[16,128], index: 0, kind: input, shape index: {}]
  %s1 = inlined_call_operand.vmem [shape: f32[256,128], index: 1, kind: input, shape index: {}]
  %s2 = inlined_call_operand.vmem [shape: f32[256,1], index: 2, kind: input, shape index: {}]
  %s3 = inlined_call_operand.vmem [shape: f32[16,1], index: 3, kind: input, shape index: {}]
  %s4 = inlined_call_operand.<no memory space> [shape: f32[1,1], index: 4, kind: input, shape index: {}]
  %s5 = inlined_call_operand.hbm [shape: f32[1,1,16], index: 5, kind: output, shape index: {}]
  %s6 = sld [smem:[#allocation0]]
  $region30: #{tpu_custom_call.1} parent=0
    _
  %s8 = ssub.s32 1, %s6
  %s9 = scalar_select 0, %s8, %s6
  %10 = sst [smem:[#allocation2]] %s4
  $region1: #{tpu_custom_call.1} parent=0
    #allocation3 [shape = 'u8[512]{0}', space=vmem, size = 0x400, scoped, tag = 'output window, operand 0, single buffered']
    #allocation4 [shape = 's32[1]{0}', space=sflag, size = 0x4, scoped, tag = 'scoped memory for tpu_custom_call.1']
    %11 = vsyncpa [#allocation4], 0
    // Predicated region
    $region2: #{tpu_custom_call.1} parent=1 // pred_check
      _
    $region3: #{tpu_custom_call.1} parent=1 // pred_check_branch
      %13 = sbr.rel (0) target = $region5
    $region4: #{tpu_custom_call.1} parent=1 // pred_region
      _
    $region5: #{tpu_custom_call.1} parent=1 // pred_fallthru
      _
    // Predicated region
    $region6: #{tpu_custom_call.1} parent=1 // pred_check
      _
    $region7: #{tpu_custom_call.1} parent=1 // pred_check_branch
      %15 = sbr.rel (0) target = $region9
    $region8: #{tpu_custom_call.1} parent=1 // pred_region
      _
    $region9: #{tpu_custom_call.1} parent=1 // pred_fallthru
      _
    // Predicated region
    $region10: #{tpu_custom_call.1} parent=1 // pred_check
      _
    $region11: #{tpu_custom_call.1} parent=1 // pred_check_branch
      %17 = sbr.rel (0) target = $region13
    $region12: #{tpu_custom_call.1} parent=1 // pred_region
      _
    $region13: #{tpu_custom_call.1} parent=1 // pred_fallthru
      _
    // Predicated region
    $region14: #{tpu_custom_call.1} parent=1 // pred_check
      _
    $region15: #{tpu_custom_call.1} parent=1 // pred_check_branch
      %19 = sbr.rel (0) target = $region17
    $region16: #{tpu_custom_call.1} parent=1 // pred_region
      _
    $region17: #{tpu_custom_call.1} parent=1 // pred_fallthru
      _
    // Predicated region
    $region18: #{tpu_custom_call.1} parent=1 // pred_check
      _
    $region19: #{tpu_custom_call.1} parent=1 // pred_check_branch
      %21 = sbr.rel (0) target = $region21
    $region20: #{tpu_custom_call.1} parent=1 // pred_region
      _
    $region21: #{tpu_custom_call.1} parent=1 // pred_fallthru
      _
    %v22 = vld [vmem:[%s1] sm:$0xff]
    %v23 = vld [vmem:[%s1 + $0x8] sm:$0xff]
    %v24 = vld [vmem:[%s1 + $0x10] sm:$0xff]
    %v25 = vld [vmem:[%s1 + $0x18] sm:$0xff]
    %v26 = vld [vmem:[%s1 + $0x20] sm:$0xff]
    %v27 = vld [vmem:[%s1 + $0x28] sm:$0xff]
    %v28 = vld [vmem:[%s1 + $0x30] sm:$0xff]
    %v29 = vld [vmem:[%s1 + $0x38] sm:$0xff]
    %v30 = vld [vmem:[%s1 + $0x40] sm:$0xff]
    %v31 = vld [vmem:[%s1 + $0x48] sm:$0xff]
    %v32 = vld [vmem:[%s1 + $0x50] sm:$0xff]
    %v33 = vld [vmem:[%s1 + $0x58] sm:$0xff]
    %v34 = vld [vmem:[%s1 + $0x60] sm:$0xff]
    %v35 = vld [vmem:[%s1 + $0x68] sm:$0xff]
    %v36 = vld [vmem:[%s1 + $0x70] sm:$0xff]
    %v37 = vld [vmem:[%s1 + $0x78] sm:$0xff]
    %v38 = vld [vmem:[%s1 + $0x80] sm:$0xff]
    %v39 = vld [vmem:[%s1 + $0x88] sm:$0xff]
    %v40 = vld [vmem:[%s1 + $0x90] sm:$0xff]
    %v41 = vld [vmem:[%s1 + $0x98] sm:$0xff]
    %v42 = vld [vmem:[%s1 + $0xa0] sm:$0xff]
    %v43 = vld [vmem:[%s1 + $0xa8] sm:$0xff]
    %v44 = vld [vmem:[%s1 + $0xb0] sm:$0xff]
    %v45 = vld [vmem:[%s1 + $0xb8] sm:$0xff]
    %v46 = vld [vmem:[%s1 + $0xc0] sm:$0xff]
    %v47 = vld [vmem:[%s1 + $0xc8] sm:$0xff]
    %v48 = vld [vmem:[%s1 + $0xd0] sm:$0xff]
    %v49 = vld [vmem:[%s1 + $0xd8] sm:$0xff]
    %v50 = vld [vmem:[%s1 + $0xe0] sm:$0xff]
    %v51 = vld [vmem:[%s1 + $0xe8] sm:$0xff]
    %v52 = vld [vmem:[%s1 + $0xf0] sm:$0xff]
    %v53 = vld [vmem:[%s1 + $0xf8] sm:$0xff]
    %v54 = vld [vmem:[%s0] sm:$0xff]
    %v55 = vld [vmem:[%s0 + $0x8] sm:$0xff]
    %v56 = vld [vmem:[%s2] sm:$0xff]
    %v57 = vld [vmem:[%s2 + $0x8] sm:$0xff]
    %v58 = vld [vmem:[%s2 + $0x10] sm:$0xff]
    %v59 = vld [vmem:[%s2 + $0x18] sm:$0xff]
    %v60 = vld [vmem:[%s2 + $0x20] sm:$0xff]
    %v61 = vld [vmem:[%s2 + $0x28] sm:$0xff]
    %v62 = vld [vmem:[%s2 + $0x30] sm:$0xff]
    %v63 = vld [vmem:[%s2 + $0x38] sm:$0xff]
    %v64 = vld [vmem:[%s2 + $0x40] sm:$0xff]
    %v65 = vld [vmem:[%s2 + $0x48] sm:$0xff]
    %v66 = vld [vmem:[%s2 + $0x50] sm:$0xff]
    %v67 = vld [vmem:[%s2 + $0x58] sm:$0xff]
    %v68 = vld [vmem:[%s2 + $0x60] sm:$0xff]
    %v69 = vld [vmem:[%s2 + $0x68] sm:$0xff]
    %v70 = vld [vmem:[%s2 + $0x70] sm:$0xff]
    %v71 = vld [vmem:[%s2 + $0x78] sm:$0xff]
    %v72 = vld [vmem:[%s2 + $0x80] sm:$0xff]
    %v73 = vld [vmem:[%s2 + $0x88] sm:$0xff]
    %v74 = vld [vmem:[%s2 + $0x90] sm:$0xff]
    %v75 = vld [vmem:[%s2 + $0x98] sm:$0xff]
    %v76 = vld [vmem:[%s2 + $0xa0] sm:$0xff]
    %v77 = vld [vmem:[%s2 + $0xa8] sm:$0xff]
    %v78 = vld [vmem:[%s2 + $0xb0] sm:$0xff]
    %v79 = vld [vmem:[%s2 + $0xb8] sm:$0xff]
    %v80 = vld [vmem:[%s2 + $0xc0] sm:$0xff]
    %v81 = vld [vmem:[%s2 + $0xc8] sm:$0xff]
    %v82 = vld [vmem:[%s2 + $0xd0] sm:$0xff]
    %v83 = vld [vmem:[%s2 + $0xd8] sm:$0xff]
    %v84 = vld [vmem:[%s2 + $0xe0] sm:$0xff]
    %v85 = vld [vmem:[%s2 + $0xe8] sm:$0xff]
    %v86 = vld [vmem:[%s2 + $0xf0] sm:$0xff]
    %v87 = vld [vmem:[%s2 + $0xf8] sm:$0xff]
    %89 = vset.pattern.permute.xlu0 0
    %90 = vperm.xlu0 %89, %v56
    %v91 = vpop.permute.xlu0 %90
    %94 = vset.pattern.permute.xlu0 0
    %95 = vperm.xlu0 %94, %v57
    %v96 = vpop.permute.xlu0 %95
    %99 = vset.pattern.permute.xlu0 0
    %100 = vperm.xlu0 %99, %v58
    %v101 = vpop.permute.xlu0 %100
    %104 = vset.pattern.permute.xlu0 0
    %105 = vperm.xlu0 %104, %v59
    %v106 = vpop.permute.xlu0 %105
    %109 = vset.pattern.permute.xlu0 0
    %110 = vperm.xlu0 %109, %v60
    %v111 = vpop.permute.xlu0 %110
    %114 = vset.pattern.permute.xlu0 0
    %115 = vperm.xlu0 %114, %v61
    %v116 = vpop.permute.xlu0 %115
    %119 = vset.pattern.permute.xlu0 0
    %120 = vperm.xlu0 %119, %v62
    %v121 = vpop.permute.xlu0 %120
    %124 = vset.pattern.permute.xlu0 0
    %125 = vperm.xlu0 %124, %v63
    %v126 = vpop.permute.xlu0 %125
    %129 = vset.pattern.permute.xlu0 0
    %130 = vperm.xlu0 %129, %v64
    %v131 = vpop.permute.xlu0 %130
    %134 = vset.pattern.permute.xlu0 0
    %135 = vperm.xlu0 %134, %v65
    %v136 = vpop.permute.xlu0 %135
    %139 = vset.pattern.permute.xlu0 0
    %140 = vperm.xlu0 %139, %v66
    %v141 = vpop.permute.xlu0 %140
    %144 = vset.pattern.permute.xlu0 0
    %145 = vperm.xlu0 %144, %v67
    %v146 = vpop.permute.xlu0 %145
    %149 = vset.pattern.permute.xlu0 0
    %150 = vperm.xlu0 %149, %v68
    %v151 = vpop.permute.xlu0 %150
    %154 = vset.pattern.permute.xlu0 0
    %155 = vperm.xlu0 %154, %v69
    %v156 = vpop.permute.xlu0 %155
    %159 = vset.pattern.permute.xlu0 0
    %160 = vperm.xlu0 %159, %v70
    %v161 = vpop.permute.xlu0 %160
    %164 = vset.pattern.permute.xlu0 0
    %165 = vperm.xlu0 %164, %v71
    %v166 = vpop.permute.xlu0 %165
    %169 = vset.pattern.permute.xlu0 0
    %170 = vperm.xlu0 %169, %v72
    %v171 = vpop.permute.xlu0 %170
    %174 = vset.pattern.permute.xlu0 0
    %175 = vperm.xlu0 %174, %v73
    %v176 = vpop.permute.xlu0 %175
    %179 = vset.pattern.permute.xlu0 0
    %180 = vperm.xlu0 %179, %v74
    %v181 = vpop.permute.xlu0 %180
    %184 = vset.pattern.permute.xlu0 0
    %185 = vperm.xlu0 %184, %v75
    %v186 = vpop.permute.xlu0 %185
    %189 = vset.pattern.permute.xlu0 0
    %190 = vperm.xlu0 %189, %v76
    %v191 = vpop.permute.xlu0 %190
    %194 = vset.pattern.permute.xlu0 0
    %195 = vperm.xlu0 %194, %v77
    %v196 = vpop.permute.xlu0 %195
    %199 = vset.pattern.permute.xlu0 0
    %200 = vperm.xlu0 %199, %v78
    %v201 = vpop.permute.xlu0 %200
    %204 = vset.pattern.permute.xlu0 0
    %205 = vperm.xlu0 %204, %v79
    %v206 = vpop.permute.xlu0 %205
    %209 = vset.pattern.permute.xlu0 0
    %210 = vperm.xlu0 %209, %v80
    %v211 = vpop.permute.xlu0 %210
    %214 = vset.pattern.permute.xlu0 0
    %215 = vperm.xlu0 %214, %v81
    %v216 = vpop.permute.xlu0 %215
    %219 = vset.pattern.permute.xlu0 0
    %220 = vperm.xlu0 %219, %v82
    %v221 = vpop.permute.xlu0 %220
    %224 = vset.pattern.permute.xlu0 0
    %225 = vperm.xlu0 %224, %v83
    %v226 = vpop.permute.xlu0 %225
    %229 = vset.pattern.permute.xlu0 0
    %230 = vperm.xlu0 %229, %v84
    %v231 = vpop.permute.xlu0 %230
    %234 = vset.pattern.permute.xlu0 0
    %235 = vperm.xlu0 %234, %v85
    %v236 = vpop.permute.xlu0 %235
    %239 = vset.pattern.permute.xlu0 0
    %240 = vperm.xlu0 %239, %v86
    %v241 = vpop.permute.xlu0 %240
    %244 = vset.pattern.permute.xlu0 0
    %245 = vperm.xlu0 %244, %v87
    %v246 = vpop.permute.xlu0 %245
    %248 = vmatprep.subr.mxu0 0.0
    %249 = vmatpush1.xpose.msra.mxu0 %v54
    %250 = vmatprep.subr.mxu0 0.0
    %251 = vmatpush1.xpose.msra.mxu0 %v55
    %252 = vmatprep.subr.mxu0 0.0
    %253 = vmatpush1.xpose.msra.mxu0 0.0
    %254 = vmatprep.subr.mxu0 0.0
    %255 = vmatpush1.xpose.msra.mxu0 0.0
    %256 = vmatprep.subr.mxu0 0.0
    %257 = vmatpush1.xpose.msra.mxu0 0.0
    %258 = vmatprep.subr.mxu0 0.0
    %259 = vmatpush1.xpose.msra.mxu0 0.0
    %260 = vmatprep.subr.mxu0 0.0
    %261 = vmatpush1.xpose.msra.mxu0 0.0
    %262 = vmatprep.subr.mxu0 0.0
    %263 = vmatpush1.xpose.msra.mxu0 0.0
    %264 = vmatprep.subr.mxu0 0.0
    %265 = vmatpush1.xpose.msra.mxu0 0.0
    %266 = vmatprep.subr.mxu0 0.0
    %267 = vmatpush1.xpose.msra.mxu0 0.0
    %268 = vmatprep.subr.mxu0 0.0
    %269 = vmatpush1.xpose.msra.mxu0 0.0
    %270 = vmatprep.subr.mxu0 0.0
    %271 = vmatpush1.xpose.msra.mxu0 0.0
    %272 = vmatprep.subr.mxu0 0.0
    %273 = vmatpush1.xpose.msra.mxu0 0.0
    %274 = vmatprep.subr.mxu0 0.0
    %275 = vmatpush1.xpose.msra.mxu0 0.0
    %276 = vmatprep.subr.mxu0 0.0
    %277 = vmatpush1.xpose.msra.mxu0 0.0
    %278 = vmatprep.subr.mxu0 0.0
    %279 = vmatpush1.xpose.msra.mxu0 0.0
    %280 = vmatprep.subr.mxu0 0.0
    %281 = vmatpush1.xpose.msra.mxu0 0.0
    %282 = vmatprep.subr.mxu0 0.0
    %283 = vmatpush1.xpose.msra.mxu0 0.0
    %284 = vmatprep.subr.mxu0 0.0
    %285 = vmatpush1.xpose.msra.mxu0 0.0
    %286 = vmatprep.subr.mxu0 0.0
    %287 = vmatpush1.xpose.msra.mxu0 0.0
    %288 = vmatprep.subr.mxu0 0.0
    %289 = vmatpush1.xpose.msra.mxu0 0.0
    %290 = vmatprep.subr.mxu0 0.0
    %291 = vmatpush1.xpose.msra.mxu0 0.0
    %292 = vmatprep.subr.mxu0 0.0
    %293 = vmatpush1.xpose.msra.mxu0 0.0
    %294 = vmatprep.subr.mxu0 0.0
    %295 = vmatpush1.xpose.msra.mxu0 0.0
    %296 = vmatprep.subr.mxu0 0.0
    %297 = vmatpush1.xpose.msra.mxu0 0.0
    %298 = vmatprep.subr.mxu0 0.0
    %299 = vmatpush1.xpose.msra.mxu0 0.0
    %300 = vmatprep.subr.mxu0 0.0
    %301 = vmatpush1.xpose.msra.mxu0 0.0
    %302 = vmatprep.subr.mxu0 0.0
    %303 = vmatpush1.xpose.msra.mxu0 0.0
    %304 = vmatprep.subr.mxu0 0.0
    %305 = vmatpush1.xpose.msra.mxu0 0.0
    %306 = vmatprep.subr.mxu0 0.0
    %307 = vmatpush1.xpose.msra.mxu0 0.0
    %308 = vmatprep.subr.mxu0 0.0
    %309 = vmatpush1.xpose.msra.mxu0 0.0
    %310 = vmatprep.subr.mxu0 0.0
    %311 = vmatpush1.xpose.msra.mxu0 0.0
    %312 = vmatprep.mubr.f32.mxu0 0.0
    %313 = vmatmul.mubr.f32.gmra.mrb[0].mxu0 %v22
    %v314 = vpop.f32.mrb[0].mxu0
    %v315 = vadd.f32 %v91, %v314
    %v316 = vpop.f32.mrb[0].mxu0
    %317 = vmatprep.mubr.f32.mxu0 0.0
    %318 = vmatmul.mubr.f32.gmra.mrb[0].mxu0 %v23
    %v319 = vpop.f32.mrb[0].mxu0
    %v320 = vadd.f32 %v96, %v319
    %v321 = vpop.f32.mrb[0].mxu0
    %322 = vmatprep.mubr.f32.mxu0 0.0
    %323 = vmatmul.mubr.f32.gmra.mrb[0].mxu0 %v24
    %v324 = vpop.f32.mrb[0].mxu0
    %v325 = vadd.f32 %v101, %v324
    %v326 = vpop.f32.mrb[0].mxu0
    %327 = vmatprep.mubr.f32.mxu0 0.0
    %328 = vmatmul.mubr.f32.gmra.mrb[0].mxu0 %v25
    %v329 = vpop.f32.mrb[0].mxu0
    %v330 = vadd.f32 %v106, %v329
    %v331 = vpop.f32.mrb[0].mxu0
    %332 = vmatprep.mubr.f32.mxu0 0.0
    %333 = vmatmul.mubr.f32.gmra.mrb[0].mxu0 %v26
    %v334 = vpop.f32.mrb[0].mxu0
    %v335 = vadd.f32 %v111, %v334
    %v336 = vpop.f32.mrb[0].mxu0
    %337 = vmatprep.mubr.f32.mxu0 0.0
    %338 = vmatmul.mubr.f32.gmra.mrb[0].mxu0 %v27
    %v339 = vpop.f32.mrb[0].mxu0
    %v340 = vadd.f32 %v116, %v339
    %v341 = vpop.f32.mrb[0].mxu0
    %342 = vmatprep.mubr.f32.mxu0 0.0
    %343 = vmatmul.mubr.f32.gmra.mrb[0].mxu0 %v28
    %v344 = vpop.f32.mrb[0].mxu0
    %v345 = vadd.f32 %v121, %v344
    %v346 = vpop.f32.mrb[0].mxu0
    %347 = vmatprep.mubr.f32.mxu0 0.0
    %348 = vmatmul.mubr.f32.gmra.mrb[0].mxu0 %v29
    %v349 = vpop.f32.mrb[0].mxu0
    %v350 = vadd.f32 %v126, %v349
    %v351 = vpop.f32.mrb[0].mxu0
    %352 = vmatprep.mubr.f32.mxu0 0.0
    %353 = vmatmul.mubr.f32.gmra.mrb[0].mxu0 %v30
    %v354 = vpop.f32.mrb[0].mxu0
    %v355 = vadd.f32 %v131, %v354
    %v356 = vpop.f32.mrb[0].mxu0
    %357 = vmatprep.mubr.f32.mxu0 0.0
    %358 = vmatmul.mubr.f32.gmra.mrb[0].mxu0 %v31
    %v359 = vpop.f32.mrb[0].mxu0
    %v360 = vadd.f32 %v136, %v359
    %v361 = vpop.f32.mrb[0].mxu0
    %362 = vmatprep.mubr.f32.mxu0 0.0
    %363 = vmatmul.mubr.f32.gmra.mrb[0].mxu0 %v32
    %v364 = vpop.f32.mrb[0].mxu0
    %v365 = vadd.f32 %v141, %v364
    %v366 = vpop.f32.mrb[0].mxu0
    %367 = vmatprep.mubr.f32.mxu0 0.0
    %368 = vmatmul.mubr.f32.gmra.mrb[0].mxu0 %v33
    %v369 = vpop.f32.mrb[0].mxu0
    %v370 = vadd.f32 %v146, %v369
    %v371 = vpop.f32.mrb[0].mxu0
    %372 = vmatprep.mubr.f32.mxu0 0.0
    %373 = vmatmul.mubr.f32.gmra.mrb[0].mxu0 %v34
    %v374 = vpop.f32.mrb[0].mxu0
    %v375 = vadd.f32 %v151, %v374
    %v376 = vpop.f32.mrb[0].mxu0
    %377 = vmatprep.mubr.f32.mxu0 0.0
    %378 = vmatmul.mubr.f32.gmra.mrb[0].mxu0 %v35
    %v379 = vpop.f32.mrb[0].mxu0
    %v380 = vadd.f32 %v156, %v379
    %v381 = vpop.f32.mrb[0].mxu0
    %382 = vmatprep.mubr.f32.mxu0 0.0
    %383 = vmatmul.mubr.f32.gmra.mrb[0].mxu0 %v36
    %v384 = vpop.f32.mrb[0].mxu0
    %v385 = vadd.f32 %v161, %v384
    %v386 = vpop.f32.mrb[0].mxu0
    %387 = vmatprep.mubr.f32.mxu0 0.0
    %388 = vmatmul.mubr.f32.gmra.mrb[0].mxu0 %v37
    %v389 = vpop.f32.mrb[0].mxu0
    %v390 = vadd.f32 %v166, %v389
    %v391 = vpop.f32.mrb[0].mxu0
    %392 = vmatprep.mubr.f32.mxu0 0.0
    %393 = vmatmul.mubr.f32.gmra.mrb[0].mxu0 %v38
    %v394 = vpop.f32.mrb[0].mxu0
    %v395 = vadd.f32 %v171, %v394
    %v396 = vpop.f32.mrb[0].mxu0
    %397 = vmatprep.mubr.f32.mxu0 0.0
    %398 = vmatmul.mubr.f32.gmra.mrb[0].mxu0 %v39
    %v399 = vpop.f32.mrb[0].mxu0
    %v400 = vadd.f32 %v176, %v399
    %v401 = vpop.f32.mrb[0].mxu0
    %402 = vmatprep.mubr.f32.mxu0 0.0
    %403 = vmatmul.mubr.f32.gmra.mrb[0].mxu0 %v40
    %v404 = vpop.f32.mrb[0].mxu0
    %v405 = vadd.f32 %v181, %v404
    %v406 = vpop.f32.mrb[0].mxu0
    %407 = vmatprep.mubr.f32.mxu0 0.0
    %408 = vmatmul.mubr.f32.gmra.mrb[0].mxu0 %v41
    %v409 = vpop.f32.mrb[0].mxu0
    %v410 = vadd.f32 %v186, %v409
    %v411 = vpop.f32.mrb[0].mxu0
    %412 = vmatprep.mubr.f32.mxu0 0.0
    %413 = vmatmul.mubr.f32.gmra.mrb[0].mxu0 %v42
    %v414 = vpop.f32.mrb[0].mxu0
    %v415 = vadd.f32 %v191, %v414
    %v416 = vpop.f32.mrb[0].mxu0
    %417 = vmatprep.mubr.f32.mxu0 0.0
    %418 = vmatmul.mubr.f32.gmra.mrb[0].mxu0 %v43
    %v419 = vpop.f32.mrb[0].mxu0
    %v420 = vadd.f32 %v196, %v419
    %v421 = vpop.f32.mrb[0].mxu0
    %422 = vmatprep.mubr.f32.mxu0 0.0
    %423 = vmatmul.mubr.f32.gmra.mrb[0].mxu0 %v44
    %v424 = vpop.f32.mrb[0].mxu0
    %v425 = vadd.f32 %v201, %v424
    %v426 = vpop.f32.mrb[0].mxu0
    %427 = vmatprep.mubr.f32.mxu0 0.0
    %428 = vmatmul.mubr.f32.gmra.mrb[0].mxu0 %v45
    %v429 = vpop.f32.mrb[0].mxu0
    %v430 = vadd.f32 %v206, %v429
    %v431 = vpop.f32.mrb[0].mxu0
    %432 = vmatprep.mubr.f32.mxu0 0.0
    %433 = vmatmul.mubr.f32.gmra.mrb[0].mxu0 %v46
    %v434 = vpop.f32.mrb[0].mxu0
    %v435 = vadd.f32 %v211, %v434
    %v436 = vpop.f32.mrb[0].mxu0
    %437 = vmatprep.mubr.f32.mxu0 0.0
    %438 = vmatmul.mubr.f32.gmra.mrb[0].mxu0 %v47
    %v439 = vpop.f32.mrb[0].mxu0
    %v440 = vadd.f32 %v216, %v439
    %v441 = vpop.f32.mrb[0].mxu0
    %442 = vmatprep.mubr.f32.mxu0 0.0
    %443 = vmatmul.mubr.f32.gmra.mrb[0].mxu0 %v48
    %v444 = vpop.f32.mrb[0].mxu0
    %v445 = vadd.f32 %v221, %v444
    %v446 = vpop.f32.mrb[0].mxu0
    %447 = vmatprep.mubr.f32.mxu0 0.0
    %448 = vmatmul.mubr.f32.gmra.mrb[0].mxu0 %v49
    %v449 = vpop.f32.mrb[0].mxu0
    %v450 = vadd.f32 %v226, %v449
    %v451 = vpop.f32.mrb[0].mxu0
    %452 = vmatprep.mubr.f32.mxu0 0.0
    %453 = vmatmul.mubr.f32.gmra.mrb[0].mxu0 %v50
    %v454 = vpop.f32.mrb[0].mxu0
    %v455 = vadd.f32 %v231, %v454
    %v456 = vpop.f32.mrb[0].mxu0
    %457 = vmatprep.mubr.f32.mxu0 0.0
    %458 = vmatmul.mubr.f32.gmra.mrb[0].mxu0 %v51
    %v459 = vpop.f32.mrb[0].mxu0
    %v460 = vadd.f32 %v236, %v459
    %v461 = vpop.f32.mrb[0].mxu0
    %462 = vmatprep.mubr.f32.mxu0 0.0
    %463 = vmatmul.mubr.f32.gmra.mrb[0].mxu0 %v52
    %v464 = vpop.f32.mrb[0].mxu0
    %v465 = vadd.f32 %v241, %v464
    %v466 = vpop.f32.mrb[0].mxu0
    %467 = vmatprep.mubr.f32.mxu0 0.0
    %468 = vmatmul.mubr.f32.gmra.mrb[0].mxu0 %v53
    %v469 = vpop.f32.mrb[0].mxu0
    %v470 = vadd.f32 %v246, %v469
    %v471 = vpop.f32.mrb[0].mxu0
    %472 = vdwg.mxu0
    %v473 = vmax.f32 %v315, 0.0
    %v474 = vmax.f32 %v320, 0.0
    %v475 = vmax.f32 %v325, 0.0
    %v476 = vmax.f32 %v330, 0.0
    %v477 = vmax.f32 %v335, 0.0
    %v478 = vmax.f32 %v340, 0.0
    %v479 = vmax.f32 %v345, 0.0
    %v480 = vmax.f32 %v350, 0.0
    %v481 = vmax.f32 %v355, 0.0
    %v482 = vmax.f32 %v360, 0.0
    %v483 = vmax.f32 %v365, 0.0
    %v484 = vmax.f32 %v370, 0.0
    %v485 = vmax.f32 %v375, 0.0
    %v486 = vmax.f32 %v380, 0.0
    %v487 = vmax.f32 %v385, 0.0
    %v488 = vmax.f32 %v390, 0.0
    %v489 = vmax.f32 %v395, 0.0
    %v490 = vmax.f32 %v400, 0.0
    %v491 = vmax.f32 %v405, 0.0
    %v492 = vmax.f32 %v410, 0.0
    %v493 = vmax.f32 %v415, 0.0
    %v494 = vmax.f32 %v420, 0.0
    %v495 = vmax.f32 %v425, 0.0
    %v496 = vmax.f32 %v430, 0.0
    %v497 = vmax.f32 %v435, 0.0
    %v498 = vmax.f32 %v440, 0.0
    %v499 = vmax.f32 %v445, 0.0
    %v500 = vmax.f32 %v450, 0.0
    %v501 = vmax.f32 %v455, 0.0
    %v502 = vmax.f32 %v460, 0.0
    %v503 = vmax.f32 %v465, 0.0
    %v504 = vmax.f32 %v470, 0.0
    %vm505 = vcmask 130048
    %v506 = vsel %vm505, %v473, -inf
    %v507 = vsel %vm505, %v474, -inf
    %v508 = vmax.f32 %v506, %v507
    %v509 = vrot.slane %v508, 4
    %v510 = vmax.f32 %v508, %v509
    %v511 = vrot.slane %v510, 2
    %v512 = vmax.f32 %v510, %v511
    %v513 = vrot.slane %v512, 1
    %v514 = vmax.f32 %v512, %v513
    %v515 = vsel %vm505, %v475, -inf
    %v516 = vsel %vm505, %v476, -inf
    %v517 = vmax.f32 %v515, %v516
    %v518 = vrot.slane %v517, 4
    %v519 = vmax.f32 %v517, %v518
    %v520 = vrot.slane %v519, 2
    %v521 = vmax.f32 %v519, %v520
    %v522 = vrot.slane %v521, 1
    %v523 = vmax.f32 %v521, %v522
    %v524 = vsel %vm505, %v477, -inf
    %v525 = vsel %vm505, %v478, -inf
    %v526 = vmax.f32 %v524, %v525
    %v527 = vrot.slane %v526, 4
    %v528 = vmax.f32 %v526, %v527
    %v529 = vrot.slane %v528, 2
    %v530 = vmax.f32 %v528, %v529
    %v531 = vrot.slane %v530, 1
    %v532 = vmax.f32 %v530, %v531
    %v533 = vsel %vm505, %v479, -inf
    %v534 = vsel %vm505, %v480, -inf
    %v535 = vmax.f32 %v533, %v534
    %v536 = vrot.slane %v535, 4
    %v537 = vmax.f32 %v535, %v536
    %v538 = vrot.slane %v537, 2
    %v539 = vmax.f32 %v537, %v538
    %v540 = vrot.slane %v539, 1
    %v541 = vmax.f32 %v539, %v540
    %v542 = vsel %vm505, %v481, -inf
    %v543 = vsel %vm505, %v482, -inf
    %v544 = vmax.f32 %v542, %v543
    %v545 = vrot.slane %v544, 4
    %v546 = vmax.f32 %v544, %v545
    %v547 = vrot.slane %v546, 2
    %v548 = vmax.f32 %v546, %v547
    %v549 = vrot.slane %v548, 1
    %v550 = vmax.f32 %v548, %v549
    %v551 = vsel %vm505, %v483, -inf
    %v552 = vsel %vm505, %v484, -inf
    %v553 = vmax.f32 %v551, %v552
    %v554 = vrot.slane %v553, 4
    %v555 = vmax.f32 %v553, %v554
    %v556 = vrot.slane %v555, 2
    %v557 = vmax.f32 %v555, %v556
    %v558 = vrot.slane %v557, 1
    %v559 = vmax.f32 %v557, %v558
    %v560 = vsel %vm505, %v485, -inf
    %v561 = vsel %vm505, %v486, -inf
    %v562 = vmax.f32 %v560, %v561
    %v563 = vrot.slane %v562, 4
    %v564 = vmax.f32 %v562, %v563
    %v565 = vrot.slane %v564, 2
    %v566 = vmax.f32 %v564, %v565
    %v567 = vrot.slane %v566, 1
    %v568 = vmax.f32 %v566, %v567
    %v569 = vsel %vm505, %v487, -inf
    %v570 = vsel %vm505, %v488, -inf
    %v571 = vmax.f32 %v569, %v570
    %v572 = vrot.slane %v571, 4
    %v573 = vmax.f32 %v571, %v572
    %v574 = vrot.slane %v573, 2
    %v575 = vmax.f32 %v573, %v574
    %v576 = vrot.slane %v575, 1
    %v577 = vmax.f32 %v575, %v576
    %v578 = vsel %vm505, %v489, -inf
    %v579 = vsel %vm505, %v490, -inf
    %v580 = vmax.f32 %v578, %v579
    %v581 = vrot.slane %v580, 4
    %v582 = vmax.f32 %v580, %v581
    %v583 = vrot.slane %v582, 2
    %v584 = vmax.f32 %v582, %v583
    %v585 = vrot.slane %v584, 1
    %v586 = vmax.f32 %v584, %v585
    %v587 = vsel %vm505, %v491, -inf
    %v588 = vsel %vm505, %v492, -inf
    %v589 = vmax.f32 %v587, %v588
    %v590 = vrot.slane %v589, 4
    %v591 = vmax.f32 %v589, %v590
    %v592 = vrot.slane %v591, 2
    %v593 = vmax.f32 %v591, %v592
    %v594 = vrot.slane %v593, 1
    %v595 = vmax.f32 %v593, %v594
    %v596 = vsel %vm505, %v493, -inf
    %v597 = vsel %vm505, %v494, -inf
    %v598 = vmax.f32 %v596, %v597
    %v599 = vrot.slane %v598, 4
    %v600 = vmax.f32 %v598, %v599
    %v601 = vrot.slane %v600, 2
    %v602 = vmax.f32 %v600, %v601
    %v603 = vrot.slane %v602, 1
    %v604 = vmax.f32 %v602, %v603
    %v605 = vsel %vm505, %v495, -inf
    %v606 = vsel %vm505, %v496, -inf
    %v607 = vmax.f32 %v605, %v606
    %v608 = vrot.slane %v607, 4
    %v609 = vmax.f32 %v607, %v608
    %v610 = vrot.slane %v609, 2
    %v611 = vmax.f32 %v609, %v610
    %v612 = vrot.slane %v611, 1
    %v613 = vmax.f32 %v611, %v612
    %v614 = vsel %vm505, %v497, -inf
    %v615 = vsel %vm505, %v498, -inf
    %v616 = vmax.f32 %v614, %v615
    %v617 = vrot.slane %v616, 4
    %v618 = vmax.f32 %v616, %v617
    %v619 = vrot.slane %v618, 2
    %v620 = vmax.f32 %v618, %v619
    %v621 = vrot.slane %v620, 1
    %v622 = vmax.f32 %v620, %v621
    %v623 = vsel %vm505, %v499, -inf
    %v624 = vsel %vm505, %v500, -inf
    %v625 = vmax.f32 %v623, %v624
    %v626 = vrot.slane %v625, 4
    %v627 = vmax.f32 %v625, %v626
    %v628 = vrot.slane %v627, 2
    %v629 = vmax.f32 %v627, %v628
    %v630 = vrot.slane %v629, 1
    %v631 = vmax.f32 %v629, %v630
    %v632 = vsel %vm505, %v501, -inf
    %v633 = vsel %vm505, %v502, -inf
    %v634 = vmax.f32 %v632, %v633
    %v635 = vrot.slane %v634, 4
    %v636 = vmax.f32 %v634, %v635
    %v637 = vrot.slane %v636, 2
    %v638 = vmax.f32 %v636, %v637
    %v639 = vrot.slane %v638, 1
    %v640 = vmax.f32 %v638, %v639
    %v641 = vsel %vm505, %v503, -inf
    %v642 = vsel %vm505, %v504, -inf
    %v643 = vmax.f32 %v641, %v642
    %v644 = vrot.slane %v643, 4
    %v645 = vmax.f32 %v643, %v644
    %v646 = vrot.slane %v645, 2
    %v647 = vmax.f32 %v645, %v646
    %v648 = vrot.slane %v647, 1
    %v649 = vmax.f32 %v647, %v648
    %v650 = vld [vmem:[%s3] sm:$0xff]
    %v651 = vld [vmem:[%s3 + $0x8] sm:$0xff]
    %653 = vset.pattern.permute.xlu0 0
    %654 = vperm.xlu0 %653, %v650
    %v655 = vpop.permute.xlu0 %654
    %657 = vset.pattern.permute.xlu0 0
    %658 = vperm.xlu0 %657, %v651
    %v659 = vpop.permute.xlu0 %658
    %v660 = vrot.slane %v655, 1
    %v661 = vrot.slane %v655, 2
    %v662 = vrot.slane %v655, 3
    %v663 = vrot.slane %v655, 4
    %v664 = vrot.slane %v655, 5
    %v665 = vrot.slane %v655, 6
    %v666 = vrot.slane %v655, 7
    %v667 = vrot.slane %v659, 1
    %v668 = vrot.slane %v659, 2
    %v669 = vrot.slane %v659, 3
    %v670 = vrot.slane %v659, 4
    %v671 = vrot.slane %v659, 5
    %v672 = vrot.slane %v659, 6
    %v673 = vrot.slane %v659, 7
    %v690 = vmul.f32 %v514, %v655
    %v691 = vmul.f32 %v523, %v660
    %v692 = vmul.f32 %v532, %v661
    %v693 = vmul.f32 %v541, %v662
    %v694 = vmul.f32 %v550, %v663
    %v695 = vmul.f32 %v559, %v664
    %v696 = vmul.f32 %v568, %v665
    %v697 = vmul.f32 %v577, %v666
    %v698 = vmul.f32 %v586, %v659
    %v699 = vmul.f32 %v595, %v667
    %v700 = vmul.f32 %v604, %v668
    %v701 = vmul.f32 %v613, %v669
    %v702 = vmul.f32 %v622, %v670
    %v703 = vmul.f32 %v631, %v671
    %v704 = vmul.f32 %v640, %v672
    %v705 = vmul.f32 %v649, %v673
    %v722 = vrot.slane %v691, 7
    %vm723 = vcmask 1041409
    %v724 = vsel %vm723, %v722, %v690
    %v725 = vrot.slane %v692, 6
    %vm726 = vcmask 1042434
    %v727 = vsel %vm726, %v725, %v724
    %v728 = vrot.slane %v693, 5
    %vm729 = vcmask 1043459
    %v730 = vsel %vm729, %v728, %v727
    %v731 = vrot.slane %v694, 4
    %vm732 = vcmask 1044484
    %v733 = vsel %vm732, %v731, %v730
    %v734 = vrot.slane %v695, 3
    %vm735 = vcmask 1045509
    %v736 = vsel %vm735, %v734, %v733
    %v737 = vrot.slane %v696, 2
    %vm738 = vcmask 1046534
    %v739 = vsel %vm738, %v737, %v736
    %v740 = vrot.slane %v697, 1
    %vm741 = vcmask 1047559
    %v742 = vsel %vm741, %v740, %v739
    %v743 = vrot.slane %v699, 7
    %v744 = vsel %vm723, %v743, %v698
    %v745 = vrot.slane %v700, 6
    %v746 = vsel %vm726, %v745, %v744
    %v747 = vrot.slane %v701, 5
    %v748 = vsel %vm729, %v747, %v746
    %v749 = vrot.slane %v702, 4
    %v750 = vsel %vm732, %v749, %v748
    %v751 = vrot.slane %v703, 3
    %v752 = vsel %vm735, %v751, %v750
    %v753 = vrot.slane %v704, 2
    %v754 = vsel %vm738, %v753, %v752
    %v755 = vrot.slane %v705, 1
    %v756 = vsel %vm741, %v755, %v754
    %v759 = vsel %vm505, %v742, 0.0
    %v760 = vsel %vm505, %v756, 0.0
    %v761 = vadd.f32 %v759, %v760
    %v762 = vrot.slane %v761, 4
    %v763 = vadd.f32 %v761, %v762
    %v764 = vrot.slane %v763, 2
    %v765 = vadd.f32 %v763, %v764
    %v766 = vrot.slane %v765, 1
    %v767 = vadd.f32 %v765, %v766
    %s768 = sld [smem:[#allocation2]]
    %v769 = vstv %s768
    %v770 = vadd.f32 %v767, %v769
    %vm771 = vcmask 122880
    %772 = vst.msk [vmem:[#allocation3] sm:$0x1] %vm771, %v770
    // Predicated region
    $region22: #{tpu_custom_call.1} parent=1 // pred_check
      _
    $region23: #{tpu_custom_call.1} parent=1 // pred_check_branch
      %774 = sbr.rel (0) target = $region25
    $region24: #{tpu_custom_call.1} parent=1 // pred_region
      %s776 = ssub.s32 16, 16
      %777 = vsyncadd [#allocation4], %s776
      %s779 = sshll.u32 [#allocation3], 4
      %s780 = int_to_ptr.vmem [resolvable:$true] %s779
      %782 = dma.vmem_to_hbm [thread:$0]  %s780, 16, %s5, [#allocation4]
    $region25: #{tpu_custom_call.1} parent=1 // pred_fallthru
      _
    // Predicated region
    $region26: #{tpu_custom_call.1} parent=1 // pred_check
      _
    $region27: #{tpu_custom_call.1} parent=1 // pred_check_branch
      %784 = sbr.rel (0) target = $region29
    $region28: #{tpu_custom_call.1} parent=1 // pred_region
      %785 = dma.done [#allocation4], 16
    $region29: #{tpu_custom_call.1} parent=1 // pred_fallthru
      _
    %786 = vsyncpa [#allocation4], 1

</llo_original>
